<compile_context>
chip_gen: v7x
topology: tpu7x:2x2x1
jax: 0.10.0
libtpu: 0.0.40
codegen_flags: <defaults>
</compile_context>

<pallas_src>
import functools
import math

import jax
import jax.numpy as jnp
from jax.experimental import pallas as pl
from jax.experimental.pallas import tpu as pltpu

LANE = 128
SUBLANE = 8


def _round_up(v, m):
    return ((v + m - 1) // m) * m


def _gcn_layer_kernel(adj_ref, h_ref, w_ref, o_ref, *, apply_relu):
    """One GraphConvolution layer for a tile of output node rows.

    adj_ref: (tm, Np)    row tile of the (padded) adjacency
    h_ref:   (Np, Fin)   full (padded) node features   -- resident across grid
    w_ref:   (Fin, Fout) full (padded) layer weight    -- resident across grid
    o_ref:   (tm, Fout)  output row tile (lane-dense, Fout % 128 == 0)
    """
    # Feature transform: X @ W  (same association as the PyTorch reference).
    xw = jnp.dot(h_ref[...], w_ref[...], preferred_element_type=jnp.float32)
    # Aggregation for this row tile: adj_tile @ (X @ W).
    out = jnp.dot(adj_ref[...], xw, preferred_element_type=jnp.float32)
    if apply_relu:
        out = jnp.maximum(out, 0.0)
    o_ref[...] = out.astype(o_ref.dtype)


def _gcn_layer(adj_p, h_p, w_p, *, tm, apply_relu):
    Np, Fin = h_p.shape
    Fout = w_p.shape[1]
    grid = (pl.cdiv(Np, tm),)
    kernel = functools.partial(_gcn_layer_kernel, apply_relu=apply_relu)
    return pl.pallas_call(
        kernel,
        out_shape=jax.ShapeDtypeStruct((Np, Fout), h_p.dtype),
        grid=grid,
        in_specs=[
            pl.BlockSpec((tm, Np), lambda i: (i, 0)),    # adjacency row tile
            pl.BlockSpec((Np, Fin), lambda i: (0, 0)),   # full features (resident)
            pl.BlockSpec((Fin, Fout), lambda i: (0, 0)), # full weight (resident)
        ],
        out_specs=pl.BlockSpec((tm, Fout), lambda i: (i, 0)),
        compiler_params=pltpu.CompilerParams(
            dimension_semantics=("parallel",),
        ),
    )(adj_p, h_p, w_p)


def gcn_forward(adj, inputs, weights, *, tm=128):
    """Eval-mode GCN forward.

    adj:     (N, N) dense (normalized) adjacency.
    inputs:  (N, F) node features, or (N, K, F) for the module's 3-D branch.
    weights: list of per-layer weights W_l with shapes chaining in->hid->...->out.
    """
    if inputs.ndim == 3:
        # Module's 3-D branch: run each slice independently, stack along axis 1.
        K = inputs.shape[1]
        outs = [gcn_forward(adj, inputs[:, k, :], weights, tm=tm) for k in range(K)]
        return jnp.stack(outs, axis=1)

    assert inputs.ndim == 2
    N, F_in = inputs.shape
    assert adj.shape == (N, N)
    n_layers = len(weights)
    dtype = inputs.dtype

    # Pad the node axis so the row tile divides evenly and adjacency columns
    # are lane-dense; pad feature dims to multiples of 128 for lane-dense
    # loads/stores. Zero padding is exact: padded rows/cols contribute zeros
    # and relu(0) == 0, so real entries are unaffected.
    tm = _round_up(max(SUBLANE, min(tm, _round_up(N, LANE))), SUBLANE)
    Np = _round_up(_round_up(N, LANE), tm)
    Fp = _round_up(F_in, LANE)

    adj_p = jnp.zeros((Np, Np), dtype).at[:N, :N].set(adj)
    h = jnp.zeros((Np, Fp), dtype).at[:N, :F_in].set(inputs)

    for l, w in enumerate(weights):
        fin, fout = w.shape
        fin_p, fout_p = _round_up(fin, LANE), _round_up(fout, LANE)
        assert fin_p == h.shape[1], "layer weight shape does not chain"
        w_p = jnp.zeros((fin_p, fout_p), dtype).at[:fin, :fout].set(w)
        is_last = l == n_layers - 1
        apply_relu = (not is_last) or (n_layers == 1)
        h = _gcn_layer(adj_p, h, w_p, tm=tm, apply_relu=apply_relu)

    out_dim = weights[-1].shape[1]
    return h[:N, :out_dim]


def init_gcn_weights(key, in_dim, hid_dim, out_dim, n_layers):
    """Matches GraphConvolution.reset_parameters: U(-r, r), r = sqrt(6/(in+out))."""
    dims = ([(in_dim, out_dim)] if n_layers == 1 else
            [(in_dim, hid_dim)] + [(hid_dim, hid_dim)] * (n_layers - 2) +
            [(hid_dim, out_dim)])
    keys = jax.random.split(key, len(dims))
    weights = []
    for k, (fi, fo) in zip(keys, dims):
        r = math.sqrt(6.0 / (fi + fo))
        weights.append(jax.random.uniform(k, (fi, fo), jnp.float32, -r, r))
    return weights


if __name__ == "__main__":
    key = jax.random.PRNGKey(0)
    k_adj, k_x, k_w = jax.random.split(key, 3)

    # Small graph: 256 nodes -> 2 grid steps at tm=128 (megacore-friendly).
    N = 256
    in_dim, hid_dim, out_dim = 16, 64, 32
    n_layers = 2
    dropout = 0.5  # identity in eval mode

    # Random symmetric adjacency with self-loops, row-normalized (dense spmm).
    a = (jax.random.uniform(k_adj, (N, N)) < 0.05).astype(jnp.float32)
    a = jnp.maximum(a, a.T)
    a = a + jnp.eye(N, dtype=jnp.float32)
    adj = a / jnp.sum(a, axis=1, keepdims=True)

    x = jax.random.normal(k_x, (N, in_dim), dtype=jnp.float32)
    weights = init_gcn_weights(k_w, in_dim, hid_dim, out_dim, n_layers)

    out = gcn_forward(adj, x, weights)
    out = jax.block_until_ready(out)

    # Pure-JAX reference (eval-mode dropout == identity), high-precision matmuls.
    hp = jax.lax.Precision.HIGHEST
    h = x
    for l in range(n_layers - 1):
        h = jnp.maximum(jnp.dot(adj, jnp.dot(h, weights[l], precision=hp),
                                precision=hp), 0.0)
    ref = jnp.dot(adj, jnp.dot(h, weights[-1], precision=hp), precision=hp)
    if n_layers == 1:
        ref = jnp.maximum(ref, 0.0)

    assert out.shape == (N, out_dim)
    rel_err = jnp.max(jnp.abs(out - ref)) / (jnp.max(jnp.abs(ref)) + 1e-12)
    assert rel_err < 2e-2, f"mismatch vs reference (rel_err={rel_err})"

    print("KERNEL_OK")
</pallas_src>

<mosaic_0001>
module attributes {stable_mosaic.version = 11 : i64} {
  func.func @_gcn_layer_kernel(%arg0: i32, %arg1: memref<128x256xf32, #tpu.memory_space<vmem>>, %arg2: memref<256x128xf32, #tpu.memory_space<vmem>>, %arg3: memref<128x128xf32, #tpu.memory_space<vmem>>, %arg4: memref<128x128xf32, #tpu.memory_space<vmem>>) attributes {dimension_semantics = [#tpu.dimension_semantics<parallel>], iteration_bounds = array<i64: 2>, scalar_prefetch = 0 : i64, scratch_operands = 0 : i64, tpu.core_type = #tpu.core_type<tc>, window_params = [{transform_indices = @transform_0, window_bounds = array<i64: 128, 256>}, {pipeline_mode = #tpu.pipeline_mode<synchronous>, transform_indices = @transform_1, window_bounds = array<i64: 256, 128>}, {pipeline_mode = #tpu.pipeline_mode<synchronous>, transform_indices = @transform_2, window_bounds = array<i64: 128, 128>}, {transform_indices = @transform_3, window_bounds = array<i64: 128, 128>}]} {
    %c0 = arith.constant 0 : index
    %c0_0 = arith.constant 0 : index
    %0 = vector.load %arg2[%c0, %c0_0] : memref<256x128xf32, #tpu.memory_space<vmem>>, vector<256x128xf32>
    %c0_1 = arith.constant 0 : index
    %c0_2 = arith.constant 0 : index
    %1 = vector.load %arg3[%c0_1, %c0_2] : memref<128x128xf32, #tpu.memory_space<vmem>>, vector<128x128xf32>
    %cst = arith.constant dense<0.000000e+00> : vector<256x128xf32>
    %2 = tpu.matmul %0, %1, %cst {dimension_numbers = #tpu.dot_dimension_numbers<[1], [0], [0], [1], [0, 0, 1, 1], [], []>} : vector<256x128xf32>, vector<128x128xf32>, vector<256x128xf32> -> vector<256x128xf32>
    %c0_3 = arith.constant 0 : index
    %c0_4 = arith.constant 0 : index
    %3 = vector.load %arg1[%c0_3, %c0_4] : memref<128x256xf32, #tpu.memory_space<vmem>>, vector<128x256xf32>
    %cst_5 = arith.constant dense<0.000000e+00> : vector<128x128xf32>
    %4 = tpu.matmul %3, %2, %cst_5 {dimension_numbers = #tpu.dot_dimension_numbers<[1], [0], [0], [1], [0, 0, 1, 1], [], []>} : vector<128x256xf32>, vector<256x128xf32>, vector<128x128xf32> -> vector<128x128xf32>
    %cst_6 = arith.constant 0.000000e+00 : f32
    %5 = vector.broadcast %cst_6 : f32 to vector<128x128xf32>
    %6 = arith.maximumf %4, %5 : vector<128x128xf32>
    %c0_7 = arith.constant 0 : index
    %c0_8 = arith.constant 0 : index
    %7 = vector.load %arg4[%c0_7, %c0_8] : memref<128x128xf32, #tpu.memory_space<vmem>>, vector<128x128xf32>
    tpu.vector_store %arg4[%c0_7, %c0_8], %6 {strides = array<i32>} : memref<128x128xf32, #tpu.memory_space<vmem>>, vector<128x128xf32>,
    return
  }
  func.func @transform_0(%arg0: i32) -> (i32, i32) {
    %c0_i32 = arith.constant 0 : i32
    %c0_i32_0 = arith.constant 0 : i32
    return %arg0, %c0_i32 : i32, i32
  }
  func.func @transform_1(%arg0: i32) -> (i32, i32) {
    %c0_i32 = arith.constant 0 : i32
    %c0_i32_0 = arith.constant 0 : i32
    %c0_i32_1 = arith.constant 0 : i32
    return %c0_i32, %c0_i32_0 : i32, i32
  }
  func.func @transform_2(%arg0: i32) -> (i32, i32) {
    %c0_i32 = arith.constant 0 : i32
    %c0_i32_0 = arith.constant 0 : i32
    %c0_i32_1 = arith.constant 0 : i32
    return %c0_i32, %c0_i32_0 : i32, i32
  }
  func.func @transform_3(%arg0: i32) -> (i32, i32) {
    %c0_i32 = arith.constant 0 : i32
    %c0_i32_0 = arith.constant 0 : i32
    return %arg0, %c0_i32 : i32, i32
  }
}

</mosaic_0001>

<llo_original>
// kernel: tpu_custom_call.1
$region0: #{tpu_custom_call.1}
  #allocation0 [shape = 'u32[]', space=smem, size = 0x4, offset = 0x4, fixed_abs, tag = 'smem constant byte address 0x4 - core index']
  #allocation1 [shape = 'u32[144,128]{1,0:T(1,128)}', space=vmem, size = 0x12000, scoped, tag = 'internal scratch']
  %s0 = inlined_call_operand.hbm [shape: f32[256,256], index: 0, kind: input, shape index: {}]
  %s1 = inlined_call_operand.hbm [shape: f32[256,128], index: 1, kind: input, shape index: {}]
  %s2 = inlined_call_operand.hbm [shape: f32[128,128], index: 2, kind: input, shape index: {}]
  %s3 = inlined_call_operand.hbm [shape: f32[256,128], index: 3, kind: output, shape index: {}]
  %s4 = sld [smem:[#allocation0]]
  $region57: #{tpu_custom_call.1} parent=0
    _
  %s6 = ssub.s32 1, %s4
  %s7 = scalar_select 0, %s6, %s4
  $region1: #{tpu_custom_call.1} parent=0
    #allocation2 [shape = 'u8[262144]{0}', space=vmem, size = 0x40000, scoped, tag = 'input window, operand 0']
    #allocation3 [shape = 's32[2]{0}', space=sflag, size = 0x8, scoped, tag = 'scoped memory for tpu_custom_call.1']
    #allocation4 [shape = 's32[2]{0}', space=sflag, size = 0x8, scoped, tag = 'scoped memory for tpu_custom_call.1']
    #allocation5 [shape = 'u8[131072]{0}', space=vmem, size = 0x20000, scoped, tag = 'input window, operand 1, single buffered']
    #allocation6 [shape = 's32[1]{0}', space=sflag, size = 0x4, scoped, tag = 'scoped memory for tpu_custom_call.1']
    #allocation7 [shape = 'u8[65536]{0}', space=vmem, size = 0x10000, scoped, tag = 'input window, operand 2, single buffered']
    #allocation8 [shape = 'u8[131072]{0}', space=vmem, size = 0x20000, scoped, tag = 'output window, operand 0']
    %8 = vsyncpa [#allocation3], 0
    %s9 = scalar_lea.sflag [#allocation3], 1
    %10 = vsyncpa %s9, 0
    %11 = vsyncpa [#allocation6], 0
    %12 = vsyncpa [#allocation4], 0
    %s13 = scalar_lea.sflag [#allocation4], 1
    %14 = vsyncpa %s13, 0
    loop: start=0, step=1, limit=4
    $region2: #{tpu_custom_call.1} parent=1 // loop_pre_header
      _
    $region3: #{tpu_custom_call.1} parent=1 // loop_header
      %s16 = sphi 0, %s20
      %p17 = scmp.ge.s32.totalorder %s16, 4
      %s26 = sphi 0, %s28
      %s29 = sphi 0, %s26
      %s30 = sphi 0, %s29
      %s46 = sphi 0, %s30
      %s50 = sphi 0, %s50
      %s52 = sphi 0, %s50
      %s53 = sphi 0, %s52
      %s67 = sphi 0, %s53
      %s71 = sphi 0, %s71
      %s73 = sphi 0, %s71
      %s74 = sphi 0, %s73
      %s88 = sphi 0, %s74
      %s94 = sphi 0, %s96
      %s97 = sphi 0, %s94
      %s98 = sphi 0, %s97
      %s114 = sphi 0, %s98
    $region4: #{tpu_custom_call.1} parent=1 // loop_header_branch
      %19 = sbr.rel (%p17) target = $region8
    $region5: #{tpu_custom_call.1} parent=1 // loop_body
      %s21 = ssub.s32 %s16, 1
      %s22 = ssub.s32 %s16, 2
      %s23 = sadd.s32 %s16, 1
      %s24 = ssub.s32 %s16, %s23
      %p25 = scmp.eq.s32.totalorder %s24, 0
      %s27 = sadd.s32 %s26, 1
      %s28 = scalar_select %p25, %s26, %s27
      %p31 = pneg %p25
      %p32 = scmp.eq.s32.totalorder %s16, 1
      %p33 = por %p31, %p32
      %p34 = scmp.ne.s32.totalorder %s26, %s29
      %p35 = scmp.eq.s32.totalorder %s16, 0
      %p36 = por %p34, %p35
      %p37 = scmp.ne.s32.totalorder %s26, %s29
      %p38 = scmp.eq.s32.totalorder %s21, 1
      %p39 = por %p37, %p38
      %p40 = scmp.ne.s32.totalorder %s29, %s30
      %p41 = scmp.eq.s32.totalorder %s21, 0
      %p42 = por %p40, %p41
      %p43 = scmp.ne.s32.totalorder %s29, %s30
      %p44 = scmp.eq.s32.totalorder %s22, 1
      %p45 = por %p43, %p44
      %p47 = scmp.ne.s32.totalorder %s30, %s46
      %p48 = scmp.eq.s32.totalorder %s22, 0
      %p49 = por %p47, %p48
      %s51 = sadd.s32 %s50, 1
      %p54 = scmp.eq.s32.totalorder %s16, 1
      %p55 = scmp.ne.s32.totalorder %s50, %s52
      %p56 = scmp.eq.s32.totalorder %s16, 0
      %p57 = por %p55, %p56
      %p58 = scmp.ne.s32.totalorder %s50, %s52
      %p59 = scmp.eq.s32.totalorder %s21, 1
      %p60 = por %p58, %p59
      %p61 = scmp.ne.s32.totalorder %s52, %s53
      %p62 = scmp.eq.s32.totalorder %s21, 0
      %p63 = por %p61, %p62
      %p64 = scmp.ne.s32.totalorder %s52, %s53
      %p65 = scmp.eq.s32.totalorder %s22, 1
      %p66 = por %p64, %p65
      %p68 = scmp.ne.s32.totalorder %s53, %s67
      %p69 = scmp.eq.s32.totalorder %s22, 0
      %p70 = por %p68, %p69
      %s72 = sadd.s32 %s71, 1
      %p75 = scmp.eq.s32.totalorder %s16, 1
      %p76 = scmp.ne.s32.totalorder %s71, %s73
      %p77 = scmp.eq.s32.totalorder %s16, 0
      %p78 = por %p76, %p77
      %p79 = scmp.ne.s32.totalorder %s71, %s73
      %p80 = scmp.eq.s32.totalorder %s21, 1
      %p81 = por %p79, %p80
      %p82 = scmp.ne.s32.totalorder %s73, %s74
      %p83 = scmp.eq.s32.totalorder %s21, 0
      %p84 = por %p82, %p83
      %p85 = scmp.ne.s32.totalorder %s73, %s74
      %p86 = scmp.eq.s32.totalorder %s22, 1
      %p87 = por %p85, %p86
      %p89 = scmp.ne.s32.totalorder %s74, %s88
      %p90 = scmp.eq.s32.totalorder %s22, 0
      %p91 = por %p89, %p90
      %s92 = ssub.s32 %s16, %s23
      %p93 = scmp.eq.s32.totalorder %s92, 0
      %s95 = sadd.s32 %s94, 1
      %s96 = scalar_select %p93, %s94, %s95
      %p99 = pneg %p93
      %p100 = scmp.eq.s32.totalorder %s16, 1
      %p101 = por %p99, %p100
      %p102 = scmp.ne.s32.totalorder %s94, %s97
      %p103 = scmp.eq.s32.totalorder %s16, 0
      %p104 = por %p102, %p103
      %p105 = scmp.ne.s32.totalorder %s94, %s97
      %p106 = scmp.eq.s32.totalorder %s21, 1
      %p107 = por %p105, %p106
      %p108 = scmp.ne.s32.totalorder %s97, %s98
      %p109 = scmp.eq.s32.totalorder %s21, 0
      %p110 = por %p108, %p109
      %p111 = scmp.ne.s32.totalorder %s97, %s98
      %p112 = scmp.eq.s32.totalorder %s22, 1
      %p113 = por %p111, %p112
      %p115 = scmp.ne.s32.totalorder %s98, %s114
      %p116 = scmp.eq.s32.totalorder %s22, 0
      %p117 = por %p115, %p116
      %p118 = scmp.le.s32.totalorder 1, %s16
      %p119 = scmp.lt.s32.totalorder %s16, 3
      %p120 = pnand %p118, %p119
      %p121 = pneg %p120
      // Predicated region
      $region9: #{tpu_custom_call.1} parent=5 // pred_check
        _
      $region10: #{tpu_custom_call.1} parent=5 // pred_check_branch
        %123 = sbr.rel (%p120) target = $region12
      $region11: #{tpu_custom_call.1} parent=5 // pred_region
        %s124 = ssub.s32 %s16, 1
        // Predicated region
        $region13: #{tpu_custom_call.1} parent=11 // pred_check
          %p125 = pneg %p63
        $region14: #{tpu_custom_call.1} parent=11 // pred_check_branch
          %127 = sbr.rel (%p125) target = $region16
        $region15: #{tpu_custom_call.1} parent=11 // pred_region
          %s129 = ssub.s32 4096, 4096
          %130 = vsyncadd [#allocation6], %s129
          %s131 = sshll.u32 [#allocation5], 4
          %s132 = int_to_ptr.vmem [resolvable:$true] %s131
          %137 = dma.hbm_to_vmem [thread:$0]  %s1, 4096, %s132, [#allocation6], 128, 128, 8
        $region16: #{tpu_custom_call.1} parent=11 // pred_fallthru
          _
        // Predicated region
        $region17: #{tpu_custom_call.1} parent=11 // pred_check
          %p138 = pneg %p84
        $region18: #{tpu_custom_call.1} parent=11 // pred_check_branch
          %140 = sbr.rel (%p138) target = $region20
        $region19: #{tpu_custom_call.1} parent=11 // pred_region
          %s142 = ssub.s32 2048, 2048
          %143 = vsyncadd [#allocation6], %s142
          %s144 = sshll.u32 [#allocation7], 4
          %s145 = int_to_ptr.vmem [resolvable:$true] %s144
          %150 = dma.hbm_to_vmem [thread:$0]  %s2, 2048, %s145, [#allocation6], 128, 128, 8
        $region20: #{tpu_custom_call.1} parent=11 // pred_fallthru
          _
      $region12: #{tpu_custom_call.1} parent=5 // pred_fallthru
        _
      %p151 = scmp.lt.s32.totalorder %s16, 2
      // Predicated region
      $region21: #{tpu_custom_call.1} parent=5 // pred_check
        %p152 = pneg %p151
      $region22: #{tpu_custom_call.1} parent=5 // pred_check_branch
        %154 = sbr.rel (%p152) target = $region24
      $region23: #{tpu_custom_call.1} parent=5 // pred_region
        // Predicated region
        $region25: #{tpu_custom_call.1} parent=23 // pred_check
          %p155 = pneg %p36
        $region26: #{tpu_custom_call.1} parent=23 // pred_check_branch
          %157 = sbr.rel (%p155) target = $region28
        $region27: #{tpu_custom_call.1} parent=23 // pred_region
          %s158 = sand.u32 %s26, 1
          %s159 = scalar_lea.sflag [#allocation3], %s158
          %s160 = sand.u32 %s26, 1
          %s161 = smul.addr %s160, 256
          %s162 = scalar_lea.vmem [#allocation2], %s161
          %s163 = smul.u32 16, %s16
          %s165 = ssub.s32 4096, 4096
          %166 = vsyncadd %s159, %s165
          %s167 = smul.addr %s163, 2
          %s168 = smul.addr %s167, 128
          %s169 = scalar_lea.hbm %s0, %s168
          %s170 = sshll.u32 %s162, 4
          %s171 = int_to_ptr.vmem [resolvable:$true] %s170
          %176 = dma.hbm_to_vmem [thread:$0]  %s169, 4096, %s171, %s159, 256, 256, 16
        $region28: #{tpu_custom_call.1} parent=23 // pred_fallthru
          _
      $region24: #{tpu_custom_call.1} parent=5 // pred_fallthru
        _
      %p177 = scmp.le.s32.totalorder 1, %s16
      %p178 = scmp.lt.s32.totalorder %s16, 3
      %p179 = pnand %p177, %p178
      %p180 = pneg %p179
      // Predicated region
      $region29: #{tpu_custom_call.1} parent=5 // pred_check
        _
      $region30: #{tpu_custom_call.1} parent=5 // pred_check_branch
        %182 = sbr.rel (%p179) target = $region32
      $region31: #{tpu_custom_call.1} parent=5 // pred_region
        %s183 = ssub.s32 %s16, 1
        %s184 = sand.u32 %s29, 1
        %s185 = scalar_lea.sflag [#allocation3], %s184
        %s186 = sand.u32 %s29, 1
        %s187 = smul.addr %s186, 256
        %s188 = scalar_lea.vmem [#allocation2], %s187
        // Predicated region
        $region33: #{tpu_custom_call.1} parent=31 // pred_check
          %p189 = pneg %p42
        $region34: #{tpu_custom_call.1} parent=31 // pred_check_branch
          %191 = sbr.rel (%p189) target = $region36
        $region35: #{tpu_custom_call.1} parent=31 // pred_region
          %192 = dma.done %s185, 4096
        $region36: #{tpu_custom_call.1} parent=31 // pred_fallthru
          _
        // Predicated region
        $region37: #{tpu_custom_call.1} parent=31 // pred_check
          %p193 = pneg %p63
        $region38: #{tpu_custom_call.1} parent=31 // pred_check_branch
          %195 = sbr.rel (%p193) target = $region40
        $region39: #{tpu_custom_call.1} parent=31 // pred_region
          %196 = dma.done [#allocation6], 4096
        $region40: #{tpu_custom_call.1} parent=31 // pred_fallthru
          _
        // Predicated region
        $region41: #{tpu_custom_call.1} parent=31 // pred_check
          %p197 = pneg %p84
        $region42: #{tpu_custom_call.1} parent=31 // pred_check_branch
          %199 = sbr.rel (%p197) target = $region44
        $region43: #{tpu_custom_call.1} parent=31 // pred_region
          %200 = dma.done [#allocation6], 2048
        $region44: #{tpu_custom_call.1} parent=31 // pred_fallthru
          _
        %s201 = sand.u32 %s29, 1
        %s202 = scalar_lea.sflag [#allocation3], %s201
        %s203 = sand.u32 %s29, 1
        %s204 = smul.addr %s203, 256
        %s205 = scalar_lea.vmem [#allocation2], %s204
        %p206 = pneg %p42
        %p207 = pneg %p39
        %p208 = pneg %p63
        %p209 = pneg %p60
        %p210 = pneg %p84
        %p211 = pneg %p81
        %p212 = pneg %p110
        %p213 = pneg %p107
        %s214 = sand.u32 %s97, 1
        %s215 = scalar_lea.sflag [#allocation4], %s214
        %s216 = sand.u32 %s97, 1
        %s217 = smul.addr %s216, 128
        %s218 = scalar_lea.vmem [#allocation8], %s217
        %s219 = smul.u32 16, %s21
        %s220 = smul.u32 16, %s21
        %v221 = vld [vmem:[#allocation5] sm:$0xff]
        %v222 = vld [vmem:[#allocation5 + $0x8] sm:$0xff]
        %v223 = vld [vmem:[#allocation5 + $0x10] sm:$0xff]
        %v224 = vld [vmem:[#allocation5 + $0x18] sm:$0xff]
        %v225 = vld [vmem:[#allocation5 + $0x20] sm:$0xff]
        %v226 = vld [vmem:[#allocation5 + $0x28] sm:$0xff]
        %v227 = vld [vmem:[#allocation5 + $0x30] sm:$0xff]
        %v228 = vld [vmem:[#allocation5 + $0x38] sm:$0xff]
        %v229 = vld [vmem:[#allocation5 + $0x40] sm:$0xff]
        %v230 = vld [vmem:[#allocation5 + $0x48] sm:$0xff]
        %v231 = vld [vmem:[#allocation5 + $0x50] sm:$0xff]
        %v232 = vld [vmem:[#allocation5 + $0x58] sm:$0xff]
        %v233 = vld [vmem:[#allocation5 + $0x60] sm:$0xff]
        %v234 = vld [vmem:[#allocation5 + $0x68] sm:$0xff]
        %v235 = vld [vmem:[#allocation5 + $0x70] sm:$0xff]
        %v236 = vld [vmem:[#allocation5 + $0x78] sm:$0xff]
        %v237 = vld [vmem:[#allocation5 + $0x80] sm:$0xff]
        %v238 = vld [vmem:[#allocation5 + $0x88] sm:$0xff]
        %v239 = vld [vmem:[#allocation5 + $0x90] sm:$0xff]
        %v240 = vld [vmem:[#allocation5 + $0x98] sm:$0xff]
        %v241 = vld [vmem:[#allocation5 + $0xa0] sm:$0xff]
        %v242 = vld [vmem:[#allocation5 + $0xa8] sm:$0xff]
        %v243 = vld [vmem:[#allocation5 + $0xb0] sm:$0xff]
        %v244 = vld [vmem:[#allocation5 + $0xb8] sm:$0xff]
        %v245 = vld [vmem:[#allocation5 + $0xc0] sm:$0xff]
        %v246 = vld [vmem:[#allocation5 + $0xc8] sm:$0xff]
        %v247 = vld [vmem:[#allocation5 + $0xd0] sm:$0xff]
        %v248 = vld [vmem:[#allocation5 + $0xd8] sm:$0xff]
        %v249 = vld [vmem:[#allocation5 + $0xe0] sm:$0xff]
        %v250 = vld [vmem:[#allocation5 + $0xe8] sm:$0xff]
        %v251 = vld [vmem:[#allocation5 + $0xf0] sm:$0xff]
        %v252 = vld [vmem:[#allocation5 + $0xf8] sm:$0xff]
        %v253 = vld [vmem:[#allocation7] sm:$0xff]
        %v254 = vld [vmem:[#allocation7 + $0x8] sm:$0xff]
        %v255 = vld [vmem:[#allocation7 + $0x10] sm:$0xff]
        %v256 = vld [vmem:[#allocation7 + $0x18] sm:$0xff]
        %v257 = vld [vmem:[#allocation7 + $0x20] sm:$0xff]
        %v258 = vld [vmem:[#allocation7 + $0x28] sm:$0xff]
        %v259 = vld [vmem:[#allocation7 + $0x30] sm:$0xff]
        %v260 = vld [vmem:[#allocation7 + $0x38] sm:$0xff]
        %v261 = vld [vmem:[#allocation7 + $0x40] sm:$0xff]
        %v262 = vld [vmem:[#allocation7 + $0x48] sm:$0xff]
        %v263 = vld [vmem:[#allocation7 + $0x50] sm:$0xff]
        %v264 = vld [vmem:[#allocation7 + $0x58] sm:$0xff]
        %v265 = vld [vmem:[#allocation7 + $0x60] sm:$0xff]
        %v266 = vld [vmem:[#allocation7 + $0x68] sm:$0xff]
        %v267 = vld [vmem:[#allocation7 + $0x70] sm:$0xff]
        %v268 = vld [vmem:[#allocation7 + $0x78] sm:$0xff]
        %269 = vmatprep.subr.mxu0 0.0
        %270 = vmatpush1.msra.mxu0 %v253
        %271 = vmatprep.subr.mxu0 0.0
        %272 = vmatpush1.msra.mxu0 %v254
        %273 = vmatprep.subr.mxu0 0.0
        %274 = vmatpush1.msra.mxu0 %v255
        %275 = vmatprep.subr.mxu0 0.0
        %276 = vmatpush1.msra.mxu0 %v256
        %277 = vmatprep.subr.mxu0 0.0
        %278 = vmatpush1.msra.mxu0 %v257
        %279 = vmatprep.subr.mxu0 0.0
        %280 = vmatpush1.msra.mxu0 %v258
        %281 = vmatprep.subr.mxu0 0.0
        %282 = vmatpush1.msra.mxu0 %v259
        %283 = vmatprep.subr.mxu0 0.0
        %284 = vmatpush1.msra.mxu0 %v260
        %285 = vmatprep.subr.mxu0 0.0
        %286 = vmatpush1.msra.mxu0 %v261
        %287 = vmatprep.subr.mxu0 0.0
        %288 = vmatpush1.msra.mxu0 %v262
        %289 = vmatprep.subr.mxu0 0.0
        %290 = vmatpush1.msra.mxu0 %v263
        %291 = vmatprep.subr.mxu0 0.0
        %292 = vmatpush1.msra.mxu0 %v264
        %293 = vmatprep.subr.mxu0 0.0
        %294 = vmatpush1.msra.mxu0 %v265
        %295 = vmatprep.subr.mxu0 0.0
        %296 = vmatpush1.msra.mxu0 %v266
        %297 = vmatprep.subr.mxu0 0.0
        %298 = vmatpush1.msra.mxu0 %v267
        %299 = vmatprep.subr.mxu0 0.0
        %300 = vmatpush1.msra.mxu0 %v268
        %301 = vmatprep.subr.mxu0 0.0
        %302 = vmatpush1.msra.mxu0 0.0
        %303 = vmatprep.subr.mxu0 0.0
        %304 = vmatpush1.msra.mxu0 0.0
        %305 = vmatprep.subr.mxu0 0.0
        %306 = vmatpush1.msra.mxu0 0.0
        %307 = vmatprep.subr.mxu0 0.0
        %308 = vmatpush1.msra.mxu0 0.0
        %309 = vmatprep.subr.mxu0 0.0
        %310 = vmatpush1.msra.mxu0 0.0
        %311 = vmatprep.subr.mxu0 0.0
        %312 = vmatpush1.msra.mxu0 0.0
        %313 = vmatprep.subr.mxu0 0.0
        %314 = vmatpush1.msra.mxu0 0.0
        %315 = vmatprep.subr.mxu0 0.0
        %316 = vmatpush1.msra.mxu0 0.0
        %317 = vmatprep.subr.mxu0 0.0
        %318 = vmatpush1.msra.mxu0 0.0
        %319 = vmatprep.subr.mxu0 0.0
        %320 = vmatpush1.msra.mxu0 0.0
        %321 = vmatprep.subr.mxu0 0.0
        %322 = vmatpush1.msra.mxu0 0.0
        %323 = vmatprep.subr.mxu0 0.0
        %324 = vmatpush1.msra.mxu0 0.0
        %325 = vmatprep.subr.mxu0 0.0
        %326 = vmatpush1.msra.mxu0 0.0
        %327 = vmatprep.subr.mxu0 0.0
        %328 = vmatpush1.msra.mxu0 0.0
        %329 = vmatprep.subr.mxu0 0.0
        %330 = vmatpush1.msra.mxu0 0.0
        %331 = vmatprep.subr.mxu0 0.0
        %332 = vmatpush1.msra.mxu0 0.0
        %333 = vmatprep.mubr.f32.mxu0 0.0
        %334 = vmatmul.mubr.f32.gmra.mrb[0].mxu0 %v221
        %v335 = vpop.f32.mrb[0].mxu0
        %v336 = vadd.f32 0.0, %v335
        %v337 = vpop.f32.mrb[0].mxu0
        %338 = vmatprep.mubr.f32.mxu0 0.0
        %339 = vmatmul.mubr.f32.gmra.mrb[0].mxu0 %v222
        %v340 = vpop.f32.mrb[0].mxu0
        %v341 = vadd.f32 0.0, %v340
        %v342 = vpop.f32.mrb[0].mxu0
        %343 = vmatprep.mubr.f32.mxu0 0.0
        %344 = vmatmul.mubr.f32.gmra.mrb[0].mxu0 %v223
        %v345 = vpop.f32.mrb[0].mxu0
        %v346 = vadd.f32 0.0, %v345
        %v347 = vpop.f32.mrb[0].mxu0
        %348 = vmatprep.mubr.f32.mxu0 0.0
        %349 = vmatmul.mubr.f32.gmra.mrb[0].mxu0 %v224
        %v350 = vpop.f32.mrb[0].mxu0
        %v351 = vadd.f32 0.0, %v350
        %v352 = vpop.f32.mrb[0].mxu0
        %353 = vmatprep.mubr.f32.mxu0 0.0
        %354 = vmatmul.mubr.f32.gmra.mrb[0].mxu0 %v225
        %v355 = vpop.f32.mrb[0].mxu0
        %v356 = vadd.f32 0.0, %v355
        %v357 = vpop.f32.mrb[0].mxu0
        %358 = vmatprep.mubr.f32.mxu0 0.0
        %359 = vmatmul.mubr.f32.gmra.mrb[0].mxu0 %v226
        %v360 = vpop.f32.mrb[0].mxu0
        %v361 = vadd.f32 0.0, %v360
        %v362 = vpop.f32.mrb[0].mxu0
        %363 = vmatprep.mubr.f32.mxu0 0.0
        %364 = vmatmul.mubr.f32.gmra.mrb[0].mxu0 %v227
        %v365 = vpop.f32.mrb[0].mxu0
        %v366 = vadd.f32 0.0, %v365
        %v367 = vpop.f32.mrb[0].mxu0
        %368 = vmatprep.mubr.f32.mxu0 0.0
        %369 = vmatmul.mubr.f32.gmra.mrb[0].mxu0 %v228
        %v370 = vpop.f32.mrb[0].mxu0
        %v371 = vadd.f32 0.0, %v370
        %v372 = vpop.f32.mrb[0].mxu0
        %373 = vmatprep.mubr.f32.mxu0 0.0
        %374 = vmatmul.mubr.f32.gmra.mrb[0].mxu0 %v229
        %v375 = vpop.f32.mrb[0].mxu0
        %v376 = vadd.f32 0.0, %v375
        %v377 = vpop.f32.mrb[0].mxu0
        %378 = vmatprep.mubr.f32.mxu0 0.0
        %379 = vmatmul.mubr.f32.gmra.mrb[0].mxu0 %v230
        %v380 = vpop.f32.mrb[0].mxu0
        %v381 = vadd.f32 0.0, %v380
        %v382 = vpop.f32.mrb[0].mxu0
        %383 = vmatprep.mubr.f32.mxu0 0.0
        %384 = vmatmul.mubr.f32.gmra.mrb[0].mxu0 %v231
        %v385 = vpop.f32.mrb[0].mxu0
        %v386 = vadd.f32 0.0, %v385
        %v387 = vpop.f32.mrb[0].mxu0
        %388 = vmatprep.mubr.f32.mxu0 0.0
        %389 = vmatmul.mubr.f32.gmra.mrb[0].mxu0 %v232
        %v390 = vpop.f32.mrb[0].mxu0
        %v391 = vadd.f32 0.0, %v390
        %v392 = vpop.f32.mrb[0].mxu0
        %393 = vmatprep.mubr.f32.mxu0 0.0
        %394 = vmatmul.mubr.f32.gmra.mrb[0].mxu0 %v233
        %v395 = vpop.f32.mrb[0].mxu0
        %v396 = vadd.f32 0.0, %v395
        %v397 = vpop.f32.mrb[0].mxu0
        %398 = vmatprep.mubr.f32.mxu0 0.0
        %399 = vmatmul.mubr.f32.gmra.mrb[0].mxu0 %v234
        %v400 = vpop.f32.mrb[0].mxu0
        %v401 = vadd.f32 0.0, %v400
        %v402 = vpop.f32.mrb[0].mxu0
        %403 = vmatprep.mubr.f32.mxu0 0.0
        %404 = vmatmul.mubr.f32.gmra.mrb[0].mxu0 %v235
        %v405 = vpop.f32.mrb[0].mxu0
        %v406 = vadd.f32 0.0, %v405
        %v407 = vpop.f32.mrb[0].mxu0
        %408 = vmatprep.mubr.f32.mxu0 0.0
        %409 = vmatmul.mubr.f32.gmra.mrb[0].mxu0 %v236
        %v410 = vpop.f32.mrb[0].mxu0
        %v411 = vadd.f32 0.0, %v410
        %v412 = vpop.f32.mrb[0].mxu0
        %413 = vmatprep.mubr.f32.mxu0 0.0
        %414 = vmatmul.mubr.f32.gmra.mrb[0].mxu0 %v237
        %v415 = vpop.f32.mrb[0].mxu0
        %v416 = vadd.f32 0.0, %v415
        %v417 = vpop.f32.mrb[0].mxu0
        %418 = vmatprep.mubr.f32.mxu0 0.0
        %419 = vmatmul.mubr.f32.gmra.mrb[0].mxu0 %v238
        %v420 = vpop.f32.mrb[0].mxu0
        %v421 = vadd.f32 0.0, %v420
        %v422 = vpop.f32.mrb[0].mxu0
        %423 = vmatprep.mubr.f32.mxu0 0.0
        %424 = vmatmul.mubr.f32.gmra.mrb[0].mxu0 %v239
        %v425 = vpop.f32.mrb[0].mxu0
        %v426 = vadd.f32 0.0, %v425
        %v427 = vpop.f32.mrb[0].mxu0
        %428 = vmatprep.mubr.f32.mxu0 0.0
        %429 = vmatmul.mubr.f32.gmra.mrb[0].mxu0 %v240
        %v430 = vpop.f32.mrb[0].mxu0
        %v431 = vadd.f32 0.0, %v430
        %v432 = vpop.f32.mrb[0].mxu0
        %433 = vmatprep.mubr.f32.mxu0 0.0
        %434 = vmatmul.mubr.f32.gmra.mrb[0].mxu0 %v241
        %v435 = vpop.f32.mrb[0].mxu0
        %v436 = vadd.f32 0.0, %v435
        %v437 = vpop.f32.mrb[0].mxu0
        %438 = vmatprep.mubr.f32.mxu0 0.0
        %439 = vmatmul.mubr.f32.gmra.mrb[0].mxu0 %v242
        %v440 = vpop.f32.mrb[0].mxu0
        %v441 = vadd.f32 0.0, %v440
        %v442 = vpop.f32.mrb[0].mxu0
        %443 = vmatprep.mubr.f32.mxu0 0.0
        %444 = vmatmul.mubr.f32.gmra.mrb[0].mxu0 %v243
        %v445 = vpop.f32.mrb[0].mxu0
        %v446 = vadd.f32 0.0, %v445
        %v447 = vpop.f32.mrb[0].mxu0
        %448 = vmatprep.mubr.f32.mxu0 0.0
        %449 = vmatmul.mubr.f32.gmra.mrb[0].mxu0 %v244
        %v450 = vpop.f32.mrb[0].mxu0
        %v451 = vadd.f32 0.0, %v450
        %v452 = vpop.f32.mrb[0].mxu0
        %453 = vmatprep.mubr.f32.mxu0 0.0
        %454 = vmatmul.mubr.f32.gmra.mrb[0].mxu0 %v245
        %v455 = vpop.f32.mrb[0].mxu0
        %v456 = vadd.f32 0.0, %v455
        %v457 = vpop.f32.mrb[0].mxu0
        %458 = vmatprep.mubr.f32.mxu0 0.0
        %459 = vmatmul.mubr.f32.gmra.mrb[0].mxu0 %v246
        %v460 = vpop.f32.mrb[0].mxu0
        %v461 = vadd.f32 0.0, %v460
        %v462 = vpop.f32.mrb[0].mxu0
        %463 = vmatprep.mubr.f32.mxu0 0.0
        %464 = vmatmul.mubr.f32.gmra.mrb[0].mxu0 %v247
        %v465 = vpop.f32.mrb[0].mxu0
        %v466 = vadd.f32 0.0, %v465
        %v467 = vpop.f32.mrb[0].mxu0
        %468 = vmatprep.mubr.f32.mxu0 0.0
        %469 = vmatmul.mubr.f32.gmra.mrb[0].mxu0 %v248
        %v470 = vpop.f32.mrb[0].mxu0
        %v471 = vadd.f32 0.0, %v470
        %v472 = vpop.f32.mrb[0].mxu0
        %473 = vmatprep.mubr.f32.mxu0 0.0
        %474 = vmatmul.mubr.f32.gmra.mrb[0].mxu0 %v249
        %v475 = vpop.f32.mrb[0].mxu0
        %v476 = vadd.f32 0.0, %v475
        %v477 = vpop.f32.mrb[0].mxu0
        %478 = vmatprep.mubr.f32.mxu0 0.0
        %479 = vmatmul.mubr.f32.gmra.mrb[0].mxu0 %v250
        %v480 = vpop.f32.mrb[0].mxu0
        %v481 = vadd.f32 0.0, %v480
        %v482 = vpop.f32.mrb[0].mxu0
        %483 = vmatprep.mubr.f32.mxu0 0.0
        %484 = vmatmul.mubr.f32.gmra.mrb[0].mxu0 %v251
        %v485 = vpop.f32.mrb[0].mxu0
        %v486 = vadd.f32 0.0, %v485
        %v487 = vpop.f32.mrb[0].mxu0
        %488 = vmatprep.mubr.f32.mxu0 0.0
        %489 = vmatmul.mubr.f32.gmra.mrb[0].mxu0 %v252
        %v490 = vpop.f32.mrb[0].mxu0
        %v491 = vadd.f32 0.0, %v490
        %v492 = vpop.f32.mrb[0].mxu0
        %493 = vdwg.mxu0
        %v494 = vld [vmem:[%s188] sm:$0xff]
        %v495 = vld [vmem:[%s188 + $0x8] sm:$0xff]
        %v496 = vld [vmem:[%s188 + $0x10] sm:$0xff]
        %v497 = vld [vmem:[%s188 + $0x18] sm:$0xff]
        %v498 = vld [vmem:[%s188 + $0x20] sm:$0xff]
        %v499 = vld [vmem:[%s188 + $0x28] sm:$0xff]
        %v500 = vld [vmem:[%s188 + $0x30] sm:$0xff]
        %v501 = vld [vmem:[%s188 + $0x38] sm:$0xff]
        %v502 = vld [vmem:[%s188 + $0x40] sm:$0xff]
        %v503 = vld [vmem:[%s188 + $0x48] sm:$0xff]
        %v504 = vld [vmem:[%s188 + $0x50] sm:$0xff]
        %v505 = vld [vmem:[%s188 + $0x58] sm:$0xff]
        %v506 = vld [vmem:[%s188 + $0x60] sm:$0xff]
        %v507 = vld [vmem:[%s188 + $0x68] sm:$0xff]
        %v508 = vld [vmem:[%s188 + $0x70] sm:$0xff]
        %v509 = vld [vmem:[%s188 + $0x78] sm:$0xff]
        %v510 = vld [vmem:[%s188 + $0x80] sm:$0xff]
        %v511 = vld [vmem:[%s188 + $0x88] sm:$0xff]
        %v512 = vld [vmem:[%s188 + $0x90] sm:$0xff]
        %v513 = vld [vmem:[%s188 + $0x98] sm:$0xff]
        %v514 = vld [vmem:[%s188 + $0xa0] sm:$0xff]
        %v515 = vld [vmem:[%s188 + $0xa8] sm:$0xff]
        %v516 = vld [vmem:[%s188 + $0xb0] sm:$0xff]
        %v517 = vld [vmem:[%s188 + $0xb8] sm:$0xff]
        %v518 = vld [vmem:[%s188 + $0xc0] sm:$0xff]
        %v519 = vld [vmem:[%s188 + $0xc8] sm:$0xff]
        %v520 = vld [vmem:[%s188 + $0xd0] sm:$0xff]
        %v521 = vld [vmem:[%s188 + $0xd8] sm:$0xff]
        %v522 = vld [vmem:[%s188 + $0xe0] sm:$0xff]
        %v523 = vld [vmem:[%s188 + $0xe8] sm:$0xff]
        %v524 = vld [vmem:[%s188 + $0xf0] sm:$0xff]
        %v525 = vld [vmem:[%s188 + $0xf8] sm:$0xff]
        %526 = vmatprep.subr.mxu0 0.0
        %527 = vmatpush1.msra.mxu0 %v336
        %528 = vmatprep.subr.mxu0 0.0
        %529 = vmatpush1.msra.mxu0 %v341
        %530 = vmatprep.subr.mxu0 0.0
        %531 = vmatpush1.msra.mxu0 %v346
        %532 = vmatprep.subr.mxu0 0.0
        %533 = vmatpush1.msra.mxu0 %v351
        %534 = vmatprep.subr.mxu0 0.0
        %535 = vmatpush1.msra.mxu0 %v356
        %536 = vmatprep.subr.mxu0 0.0
        %537 = vmatpush1.msra.mxu0 %v361
        %538 = vmatprep.subr.mxu0 0.0
        %539 = vmatpush1.msra.mxu0 %v366
        %540 = vmatprep.subr.mxu0 0.0
        %541 = vmatpush1.msra.mxu0 %v371
        %542 = vmatprep.subr.mxu0 0.0
        %543 = vmatpush1.msra.mxu0 %v376
        %544 = vmatprep.subr.mxu0 0.0
        %545 = vmatpush1.msra.mxu0 %v381
        %546 = vmatprep.subr.mxu0 0.0
        %547 = vmatpush1.msra.mxu0 %v386
        %548 = vmatprep.subr.mxu0 0.0
        %549 = vmatpush1.msra.mxu0 %v391
        %550 = vmatprep.subr.mxu0 0.0
        %551 = vmatpush1.msra.mxu0 %v396
        %552 = vmatprep.subr.mxu0 0.0
        %553 = vmatpush1.msra.mxu0 %v401
        %554 = vmatprep.subr.mxu0 0.0
        %555 = vmatpush1.msra.mxu0 %v406
        %556 = vmatprep.subr.mxu0 0.0
        %557 = vmatpush1.msra.mxu0 %v411
        %558 = vmatprep.subr.mxu0 0.0
        %559 = vmatpush1.msra.mxu0 %v416
        %560 = vmatprep.subr.mxu0 0.0
        %561 = vmatpush1.msra.mxu0 %v421
        %562 = vmatprep.subr.mxu0 0.0
        %563 = vmatpush1.msra.mxu0 %v426
        %564 = vmatprep.subr.mxu0 0.0
        %565 = vmatpush1.msra.mxu0 %v431
        %566 = vmatprep.subr.mxu0 0.0
        %567 = vmatpush1.msra.mxu0 %v436
        %568 = vmatprep.subr.mxu0 0.0
        %569 = vmatpush1.msra.mxu0 %v441
        %570 = vmatprep.subr.mxu0 0.0
        %571 = vmatpush1.msra.mxu0 %v446
        %572 = vmatprep.subr.mxu0 0.0
        %573 = vmatpush1.msra.mxu0 %v451
        %574 = vmatprep.subr.mxu0 0.0
        %575 = vmatpush1.msra.mxu0 %v456
        %576 = vmatprep.subr.mxu0 0.0
        %577 = vmatpush1.msra.mxu0 %v461
        %578 = vmatprep.subr.mxu0 0.0
        %579 = vmatpush1.msra.mxu0 %v466
        %580 = vmatprep.subr.mxu0 0.0
        %581 = vmatpush1.msra.mxu0 %v471
        %582 = vmatprep.subr.mxu0 0.0
        %583 = vmatpush1.msra.mxu0 %v476
        %584 = vmatprep.subr.mxu0 0.0
        %585 = vmatpush1.msra.mxu0 %v481
        %586 = vmatprep.subr.mxu0 0.0
        %587 = vmatpush1.msra.mxu0 %v486
        %588 = vmatprep.subr.mxu0 0.0
        %589 = vmatpush1.msra.mxu0 %v491
        %590 = vmatprep.mubr.f32.mxu0 %v495
        %591 = vmatmul.mubr.f32.gmra.mrb[0].mxu0 %v494
        %v592 = vpop.f32.mrb[0].mxu0
        %v593 = vadd.f32 0.0, %v592
        %v594 = vpop.f32.mrb[0].mxu0
        %595 = vmatprep.mubr.f32.mxu0 %v497
        %596 = vmatmul.mubr.f32.gmra.mrb[0].mxu0 %v496
        %v597 = vpop.f32.mrb[0].mxu0
        %v598 = vadd.f32 0.0, %v597
        %v599 = vpop.f32.mrb[0].mxu0
        %600 = vmatprep.mubr.f32.mxu0 %v499
        %601 = vmatmul.mubr.f32.gmra.mrb[0].mxu0 %v498
        %v602 = vpop.f32.mrb[0].mxu0
        %v603 = vadd.f32 0.0, %v602
        %v604 = vpop.f32.mrb[0].mxu0
        %605 = vmatprep.mubr.f32.mxu0 %v501
        %606 = vmatmul.mubr.f32.gmra.mrb[0].mxu0 %v500
        %v607 = vpop.f32.mrb[0].mxu0
        %v608 = vadd.f32 0.0, %v607
        %v609 = vpop.f32.mrb[0].mxu0
        %610 = vmatprep.mubr.f32.mxu0 %v503
        %611 = vmatmul.mubr.f32.gmra.mrb[0].mxu0 %v502
        %v612 = vpop.f32.mrb[0].mxu0
        %v613 = vadd.f32 0.0, %v612
        %v614 = vpop.f32.mrb[0].mxu0
        %615 = vmatprep.mubr.f32.mxu0 %v505
        %616 = vmatmul.mubr.f32.gmra.mrb[0].mxu0 %v504
        %v617 = vpop.f32.mrb[0].mxu0
        %v618 = vadd.f32 0.0, %v617
        %v619 = vpop.f32.mrb[0].mxu0
        %620 = vmatprep.mubr.f32.mxu0 %v507
        %621 = vmatmul.mubr.f32.gmra.mrb[0].mxu0 %v506
        %v622 = vpop.f32.mrb[0].mxu0
        %v623 = vadd.f32 0.0, %v622
        %v624 = vpop.f32.mrb[0].mxu0
        %625 = vmatprep.mubr.f32.mxu0 %v509
        %626 = vmatmul.mubr.f32.gmra.mrb[0].mxu0 %v508
        %v627 = vpop.f32.mrb[0].mxu0
        %v628 = vadd.f32 0.0, %v627
        %v629 = vpop.f32.mrb[0].mxu0
        %630 = vmatprep.mubr.f32.mxu0 %v511
        %631 = vmatmul.mubr.f32.gmra.mrb[0].mxu0 %v510
        %v632 = vpop.f32.mrb[0].mxu0
        %v633 = vadd.f32 0.0, %v632
        %v634 = vpop.f32.mrb[0].mxu0
        %635 = vmatprep.mubr.f32.mxu0 %v513
        %636 = vmatmul.mubr.f32.gmra.mrb[0].mxu0 %v512
        %v637 = vpop.f32.mrb[0].mxu0
        %v638 = vadd.f32 0.0, %v637
        %v639 = vpop.f32.mrb[0].mxu0
        %640 = vmatprep.mubr.f32.mxu0 %v515
        %641 = vmatmul.mubr.f32.gmra.mrb[0].mxu0 %v514
        %v642 = vpop.f32.mrb[0].mxu0
        %v643 = vadd.f32 0.0, %v642
        %v644 = vpop.f32.mrb[0].mxu0
        %645 = vmatprep.mubr.f32.mxu0 %v517
        %646 = vmatmul.mubr.f32.gmra.mrb[0].mxu0 %v516
        %v647 = vpop.f32.mrb[0].mxu0
        %v648 = vadd.f32 0.0, %v647
        %v649 = vpop.f32.mrb[0].mxu0
        %650 = vmatprep.mubr.f32.mxu0 %v519
        %651 = vmatmul.mubr.f32.gmra.mrb[0].mxu0 %v518
        %v652 = vpop.f32.mrb[0].mxu0
        %v653 = vadd.f32 0.0, %v652
        %v654 = vpop.f32.mrb[0].mxu0
        %655 = vmatprep.mubr.f32.mxu0 %v521
        %656 = vmatmul.mubr.f32.gmra.mrb[0].mxu0 %v520
        %v657 = vpop.f32.mrb[0].mxu0
        %v658 = vadd.f32 0.0, %v657
        %v659 = vpop.f32.mrb[0].mxu0
        %660 = vmatprep.mubr.f32.mxu0 %v523
        %661 = vmatmul.mubr.f32.gmra.mrb[0].mxu0 %v522
        %v662 = vpop.f32.mrb[0].mxu0
        %v663 = vadd.f32 0.0, %v662
        %v664 = vpop.f32.mrb[0].mxu0
        %665 = vmatprep.mubr.f32.mxu0 %v525
        %666 = vmatmul.mubr.f32.gmra.mrb[0].mxu0 %v524
        %v667 = vpop.f32.mrb[0].mxu0
        %v668 = vadd.f32 0.0, %v667
        %v669 = vpop.f32.mrb[0].mxu0
        %670 = vdwg.mxu0
        %v671 = vmax.f32 %v593, 0.0
        %v672 = vmax.f32 %v598, 0.0
        %v673 = vmax.f32 %v603, 0.0
        %v674 = vmax.f32 %v608, 0.0
        %v675 = vmax.f32 %v613, 0.0
        %v676 = vmax.f32 %v618, 0.0
        %v677 = vmax.f32 %v623, 0.0
        %v678 = vmax.f32 %v628, 0.0
        %v679 = vmax.f32 %v633, 0.0
        %v680 = vmax.f32 %v638, 0.0
        %v681 = vmax.f32 %v643, 0.0
        %v682 = vmax.f32 %v648, 0.0
        %v683 = vmax.f32 %v653, 0.0
        %v684 = vmax.f32 %v658, 0.0
        %v685 = vmax.f32 %v663, 0.0
        %v686 = vmax.f32 %v668, 0.0
        %687 = vst [vmem:[%s218] sm:$0xff] %v671
        %688 = vst [vmem:[%s218 + $0x8] sm:$0xff] %v672
        %689 = vst [vmem:[%s218 + $0x10] sm:$0xff] %v673
        %690 = vst [vmem:[%s218 + $0x18] sm:$0xff] %v674
        %691 = vst [vmem:[%s218 + $0x20] sm:$0xff] %v675
        %692 = vst [vmem:[%s218 + $0x28] sm:$0xff] %v676
        %693 = vst [vmem:[%s218 + $0x30] sm:$0xff] %v677
        %694 = vst [vmem:[%s218 + $0x38] sm:$0xff] %v678
        %695 = vst [vmem:[%s218 + $0x40] sm:$0xff] %v679
        %696 = vst [vmem:[%s218 + $0x48] sm:$0xff] %v680
        %697 = vst [vmem:[%s218 + $0x50] sm:$0xff] %v681
        %698 = vst [vmem:[%s218 + $0x58] sm:$0xff] %v682
        %699 = vst [vmem:[%s218 + $0x60] sm:$0xff] %v683
        %700 = vst [vmem:[%s218 + $0x68] sm:$0xff] %v684
        %701 = vst [vmem:[%s218 + $0x70] sm:$0xff] %v685
        %702 = vst [vmem:[%s218 + $0x78] sm:$0xff] %v686
        %s703 = sand.u32 %s97, 1
        %s704 = scalar_lea.sflag [#allocation4], %s703
        %s705 = sand.u32 %s97, 1
        %s706 = smul.addr %s705, 128
        %s707 = scalar_lea.vmem [#allocation8], %s706
        // Predicated region
        $region45: #{tpu_custom_call.1} parent=31 // pred_check
          %p708 = pneg %p107
        $region46: #{tpu_custom_call.1} parent=31 // pred_check_branch
          %710 = sbr.rel (%p708) target = $region48
        $region47: #{tpu_custom_call.1} parent=31 // pred_region
          %s711 = smul.u32 16, %s21
          %s713 = ssub.s32 2048, 2048
          %714 = vsyncadd %s704, %s713
          %s715 = smul.addr %s711, 128
          %s716 = scalar_lea.hbm %s3, %s715
          %s717 = sshll.u32 %s707, 4
          %s718 = int_to_ptr.vmem [resolvable:$true] %s717
          %723 = dma.vmem_to_hbm [thread:$0]  %s718, 2048, %s716, %s704, 128, 128, 8
        $region48: #{tpu_custom_call.1} parent=31 // pred_fallthru
          _
      $region32: #{tpu_custom_call.1} parent=5 // pred_fallthru
        _
      %p724 = scmp.le.s32.totalorder 2, %s16
      // Predicated region
      $region49: #{tpu_custom_call.1} parent=5 // pred_check
        %p725 = pneg %p724
      $region50: #{tpu_custom_call.1} parent=5 // pred_check_branch
        %727 = sbr.rel (%p725) target = $region52
      $region51: #{tpu_custom_call.1} parent=5 // pred_region
        %s728 = ssub.s32 %s16, 2
        // Predicated region
        $region53: #{tpu_custom_call.1} parent=51 // pred_check
          %p729 = pneg %p113
        $region54: #{tpu_custom_call.1} parent=51 // pred_check_branch
          %731 = sbr.rel (%p729) target = $region56
        $region55: #{tpu_custom_call.1} parent=51 // pred_region
          %s732 = sand.u32 %s98, 1
          %s733 = scalar_lea.sflag [#allocation4], %s732
          %s734 = sand.u32 %s98, 1
          %s735 = smul.addr %s734, 128
          %s736 = scalar_lea.vmem [#allocation8], %s735
          %737 = dma.done %s733, 2048
        $region56: #{tpu_custom_call.1} parent=51 // pred_fallthru
          _
      $region52: #{tpu_custom_call.1} parent=5 // pred_fallthru
        _
    $region6: #{tpu_custom_call.1} parent=1 // loop_footer
      %s20 = sadd.s32 1, %s16
    $region7: #{tpu_custom_call.1} parent=1 // loop_footer_branch
      %15 = sbr.rel target = $region3
    $region8: #{tpu_custom_call.1} parent=1 // loop_exit
      _
    %738 = vsyncpa [#allocation3], 1
    %s739 = scalar_lea.sflag [#allocation3], 1
    %740 = vsyncpa %s739, 1
    %741 = vsyncpa [#allocation6], 1
    %742 = vsyncpa [#allocation4], 1
    %s743 = scalar_lea.sflag [#allocation4], 1
    %744 = vsyncpa %s743, 1

</llo_original>
